<compile_context>
chip_gen: v6e
topology: v6e:2x2x1
jax: 0.10.0
libtpu: 0.0.40
codegen_flags: <defaults>
</compile_context>

<pallas_src>
import functools

import jax
import jax.numpy as jnp
from jax import lax
from jax.experimental import pallas as pl
from jax.experimental.pallas import tpu as pltpu


def _round_up(a, m):
    return (a + m - 1) // m * m


def rule_layer_kernel(x_ref, w_ref, cls_ref, o_ref, *, num_vars, rules_pad):
    """One batch tile of the NEFCLASS rule layer.

    x_ref:   [K, TB]      flattened memberships (K = V*S), batch on lanes (bf16)
    w_ref:   [V*Rp, K]    block-diagonal one-hot condition selector (0/1, bf16)
    cls_ref: [Rp, Cp]     one-hot rule -> class assignment (f32, padded)
    o_ref:   [Cp, TB]     per-class firing strengths (batch on lanes, f32)
    """
    # Fused one-hot "gather" for all variables in a single MXU matmul:
    #   sel[v*Rp + r, b] = x[v, cond[r, v], b]
    sel = jnp.dot(w_ref[...], x_ref[...],
                  preferred_element_type=jnp.float32)            # [V*Rp, TB] f32

    # Fuzzy AND (min T-norm) across variables: unrolled VPU minimum chain over
    # sublane-aligned static slices (Rp is a multiple of 8); no reshape, no XLU.
    firing = sel[0:rules_pad, :]
    for v in range(1, num_vars):
        firing = jnp.minimum(firing, sel[v * rules_pad:(v + 1) * rules_pad, :])
    # firing: [Rp, TB] f32

    # Per-class sum: out[c, b] = sum_r cls[r, c] * firing[r, b]
    # (contract dim 0 of both operands -> [Cp, TB]; batch stays lane-dense.)
    o_ref[...] = lax.dot_general(
        cls_ref[...], firing,
        dimension_numbers=(((0,), (0,)), ((), ())),
        preferred_element_type=jnp.float32)


def pack_rule_base(conditions, rule_cls, num_classes, num_sets, *,
                   selector_dtype=jnp.bfloat16):
    """Builds the static rule-base operands ONCE (hoisted out of forward)."""
    R, V = conditions.shape
    S = num_sets
    K = V * S
    Rp = max(_round_up(R, 8), 8)
    Cp = max(_round_up(num_classes, 8), 8)

    # Block-diagonal one-hot selector:
    #   W[v*Rp + r, v2*S + s] = (conditions[r, v] == s) & (v == v2)
    cond_oh = jax.nn.one_hot(conditions, S, dtype=jnp.float32)        # [R, V, S]
    cond_t = jnp.transpose(cond_oh, (1, 0, 2))                         # [V, R, S]
    w = cond_t[:, :, None, :] * jnp.eye(V, dtype=jnp.float32)[:, None, :, None]
    w = jnp.pad(w, ((0, 0), (0, Rp - R), (0, 0), (0, 0)))              # pad rules
    w = w.reshape(V * Rp, K).astype(selector_dtype)                    # 0/1: exact

    # Rule -> class one-hot; padded rule rows and padded class columns are all
    # zero, so they contribute exactly 0 to the output.
    cls_oh = jax.nn.one_hot(rule_cls, num_classes, dtype=jnp.float32)  # [R, C]
    cls_oh = jnp.pad(cls_oh, ((0, Rp - R), (0, Cp - num_classes)))     # [Rp, Cp]

    return w, cls_oh, Rp, Cp


def rule_layer_forward(x, w, cls_oh, *, num_classes, rules_pad, classes_pad,
                       block_b=None, compute_dtype=jnp.bfloat16):
    """x: [V, S, B] memberships.  Returns [B, num_classes] (f32)."""
    V, S, B = x.shape
    K = V * S
    Rp, Cp = rules_pad, classes_pad

    if block_b is None:
        Bp = _round_up(B, 128)
        if Bp <= 128:
            block_b = 128
        else:
            # Large tiles amortize the ~0.35us/grid-step overhead, but keep at
            # least 2 grid steps so ("parallel",) engages both v7x TensorCores.
            block_b = min(2048, max(128, _round_up(Bp // 2, 128)))
    grid_b = pl.cdiv(B, block_b)

    # No pad / copy of X: the reshape is free; the bf16 cast halves X's HBM
    # traffic (ideally the upstream membership kernel already emits bf16, in
    # which case astype is a no-op).
    x_flat = x.reshape(K, B).astype(compute_dtype)
    w = w.astype(compute_dtype)

    itemsize = jnp.dtype(compute_dtype).itemsize
    # Scoped-VMEM budget: double-buffered X/out tiles, resident W/CLS (default
    # double-buffered), plus the f32 sel/firing intermediates; 2x headroom.
    vmem_need = (2 * K * block_b * itemsize
                 + 2 * V * Rp * K * itemsize
                 + 2 * Rp * Cp * 4
                 + 2 * Cp * block_b * 4
                 + (V * Rp + Rp) * block_b * 4)
    vmem_limit = int(min(max(2 * vmem_need, 16 << 20), 64 << 20))

    bytes_acc = (K * B * itemsize + V * Rp * K * itemsize
                 + Rp * Cp * 4 + Cp * B * 4)
    flops = 2 * (V * Rp) * K * B + 2 * Rp * Cp * B

    kernel = functools.partial(rule_layer_kernel, num_vars=V, rules_pad=Rp)

    out_cb = pl.pallas_call(
        kernel,
        out_shape=jax.ShapeDtypeStruct((Cp, B), jnp.float32),
        grid=(grid_b,),
        in_specs=[
            # X: full (unpadded) K on sublanes, batch tiled on lanes.
            pl.BlockSpec((K, block_b), lambda i: (0, i)),
            # W / CLS: resident constants (constant index_map).  For very large
            # rule bases add pipeline_mode=pl.Buffered(1) to halve their VMEM.
            pl.BlockSpec((V * Rp, K), lambda i: (0, 0)),
            pl.BlockSpec((Rp, Cp), lambda i: (0, 0)),
        ],
        out_specs=pl.BlockSpec((Cp, block_b), lambda i: (0, i)),  # lane-dense B
        compiler_params=pltpu.CompilerParams(
            dimension_semantics=("parallel",),       # megacore on v7x
            vmem_limit_bytes=vmem_limit),
        cost_estimate=pl.CostEstimate(
            flops=flops, transcendentals=0, bytes_accessed=bytes_acc),
    )(x_flat, w, cls_oh)

    # [Cp, B] -> [B, C] (matches torch.stack(..., dim=1)); strip class padding.
    return out_cb[:num_classes, :].T


def make_rule_layer(conditions, rule_cls, num_classes, num_sets, *,
                    block_b=None, compute_dtype=jnp.bfloat16):
    """Equivalent of RuleLayer.__init__ + add_rule calls: packs the static rule
    base once and returns a jitted forward(x: [V, S, B]) -> [B, num_classes]."""
    # TODO(synk): dynamic add_rule / rule_count bookkeeping (dict of RuleDef) has
    # no in-kernel equivalent; the rule base is packed statically here instead.
    w, cls_oh, Rp, Cp = pack_rule_base(conditions, rule_cls, num_classes,
                                       num_sets, selector_dtype=compute_dtype)

    @jax.jit
    def forward(x):
        return rule_layer_forward(x, w, cls_oh, num_classes=num_classes,
                                  rules_pad=Rp, classes_pad=Cp,
                                  block_b=block_b, compute_dtype=compute_dtype)

    return forward


def reference_forward(x, conditions, rule_cls, num_classes):
    # Pure-JAX re-implementation of the PyTorch forward for verification.
    V, S, B = x.shape
    R = conditions.shape[0]
    firing = jnp.stack(
        [jnp.min(jnp.stack([x[v, conditions[r, v]] for v in range(V)], axis=0),
                 axis=0)
         for r in range(R)], axis=0)                   # [R, B]
    out = []
    for c in range(num_classes):
        idx = [r for r in range(R) if int(rule_cls[r]) == c]
        out.append(jnp.sum(firing[jnp.array(idx)], axis=0))
    return jnp.stack(out, axis=1)                      # [B, C]


if __name__ == "__main__":
    key = jax.random.PRNGKey(0)
    k_x, k_cond = jax.random.split(key)

    num_classes = 3   # C
    V = 4             # number of input (fuzzy) variables
    S = 5             # fuzzy sets per variable
    B = 16            # batch
    rules_per_class = 3
    R = num_classes * rules_per_class

    # fuzz_vars: list of V tensors [S, B], packed as X[V, S, B]
    x = jax.random.uniform(k_x, (V, S, B), dtype=jnp.float32)

    # deterministic rule base: conditions[r, v] in [0, S), rule r -> class r // rules_per_class
    conditions = jax.random.randint(k_cond, (R, V), 0, S)
    rule_cls = jnp.arange(R) // rules_per_class

    forward = make_rule_layer(conditions, rule_cls, num_classes, S)
    out = jax.block_until_ready(forward(x))

    ref = reference_forward(x, conditions, rule_cls, num_classes)
    assert out.shape == (B, num_classes)
    # bf16 memberships lose ~3 decimal digits; accumulation stays f32.
    assert jnp.allclose(out, ref, atol=3e-2, rtol=3e-2)

    print("KERNEL_OK")
</pallas_src>

<mosaic_0001>
module attributes {stable_mosaic.version = 11 : i64} {
  func.func @rule_layer_kernel(%arg0: i32, %arg1: memref<20x128xbf16, #tpu.memory_space<vmem>>, %arg2: memref<64x20xbf16, #tpu.memory_space<vmem>>, %arg3: memref<16x8xf32, #tpu.memory_space<vmem>>, %arg4: memref<8x128xf32, #tpu.memory_space<vmem>>) attributes {dimension_semantics = [#tpu.dimension_semantics<parallel>], iteration_bounds = array<i64: 1>, scalar_prefetch = 0 : i64, scratch_operands = 0 : i64, tpu.core_type = #tpu.core_type<tc>, window_params = [{transform_indices = @transform_0, window_bounds = array<i64: 20, 128>}, {pipeline_mode = #tpu.pipeline_mode<synchronous>, transform_indices = @transform_1, window_bounds = array<i64: 64, 20>}, {pipeline_mode = #tpu.pipeline_mode<synchronous>, transform_indices = @transform_2, window_bounds = array<i64: 16, 8>}, {transform_indices = @transform_3, window_bounds = array<i64: 8, 128>}]} {
    %c0 = arith.constant 0 : index
    %c0_0 = arith.constant 0 : index
    %0 = vector.load %arg2[%c0, %c0_0] : memref<64x20xbf16, #tpu.memory_space<vmem>>, vector<64x20xbf16>
    %c0_1 = arith.constant 0 : index
    %c0_2 = arith.constant 0 : index
    %1 = vector.load %arg1[%c0_1, %c0_2] : memref<20x128xbf16, #tpu.memory_space<vmem>>, vector<20x128xbf16>
    %cst = arith.constant dense<0.000000e+00> : vector<64x128xf32>
    %2 = tpu.matmul %0, %1, %cst {dimension_numbers = #tpu.dot_dimension_numbers<[1], [0], [0], [1], [0, 0, 1, 1], [], []>} : vector<64x20xbf16>, vector<20x128xbf16>, vector<64x128xf32> -> vector<64x128xf32>
    %3 = vector.extract_strided_slice %2 {offsets = [0, 0], sizes = [16, 128], strides = [1, 1]} : vector<64x128xf32> to vector<16x128xf32>
    %4 = vector.extract_strided_slice %2 {offsets = [16, 0], sizes = [16, 128], strides = [1, 1]} : vector<64x128xf32> to vector<16x128xf32>
    %5 = arith.minimumf %3, %4 : vector<16x128xf32>
    %6 = vector.extract_strided_slice %2 {offsets = [32, 0], sizes = [16, 128], strides = [1, 1]} : vector<64x128xf32> to vector<16x128xf32>
    %7 = arith.minimumf %5, %6 : vector<16x128xf32>
    %8 = vector.extract_strided_slice %2 {offsets = [48, 0], sizes = [16, 128], strides = [1, 1]} : vector<64x128xf32> to vector<16x128xf32>
    %9 = arith.minimumf %7, %8 : vector<16x128xf32>
    %c0_3 = arith.constant 0 : index
    %c0_4 = arith.constant 0 : index
    %10 = vector.load %arg3[%c0_3, %c0_4] : memref<16x8xf32, #tpu.memory_space<vmem>>, vector<16x8xf32>
    %cst_5 = arith.constant dense<0.000000e+00> : vector<8x128xf32>
    %11 = tpu.matmul %10, %9, %cst_5 {dimension_numbers = #tpu.dot_dimension_numbers<[0], [0], [1], [1], [0, 1, 1, 1], [], []>} : vector<16x8xf32>, vector<16x128xf32>, vector<8x128xf32> -> vector<8x128xf32>
    %c0_6 = arith.constant 0 : index
    %c0_7 = arith.constant 0 : index
    %12 = vector.load %arg4[%c0_6, %c0_7] : memref<8x128xf32, #tpu.memory_space<vmem>>, vector<8x128xf32>
    tpu.vector_store %arg4[%c0_6, %c0_7], %11 {strides = array<i32>} : memref<8x128xf32, #tpu.memory_space<vmem>>, vector<8x128xf32>,
    return
  }
  func.func @transform_0(%arg0: i32) -> (i32, i32) {
    %c0_i32 = arith.constant 0 : i32
    %c0_i32_0 = arith.constant 0 : i32
    return %c0_i32, %arg0 : i32, i32
  }
  func.func @transform_1(%arg0: i32) -> (i32, i32) {
    %c0_i32 = arith.constant 0 : i32
    %c0_i32_0 = arith.constant 0 : i32
    %c0_i32_1 = arith.constant 0 : i32
    return %c0_i32, %c0_i32_0 : i32, i32
  }
  func.func @transform_2(%arg0: i32) -> (i32, i32) {
    %c0_i32 = arith.constant 0 : i32
    %c0_i32_0 = arith.constant 0 : i32
    %c0_i32_1 = arith.constant 0 : i32
    return %c0_i32, %c0_i32_0 : i32, i32
  }
  func.func @transform_3(%arg0: i32) -> (i32, i32) {
    %c0_i32 = arith.constant 0 : i32
    %c0_i32_0 = arith.constant 0 : i32
    return %c0_i32, %arg0 : i32, i32
  }
}

</mosaic_0001>

<llo_original>
// kernel: forward.1
$region0: #{forward.1}
  #allocation0 [shape = 'u32[]', space=smem, size = 0x4, offset = 0x4, fixed_abs, tag = 'smem constant byte address 0x4 - core index']
  #allocation1 [shape = 'u32[144,128]{1,0:T(1,128)}', space=vmem, size = 0x12000, scoped, tag = 'internal scratch']
  %s0 = inlined_call_operand.vmem [shape: bf16[20,16], index: 0, kind: input, shape index: {}]
  %s1 = inlined_call_operand.vmem [shape: bf16[64,20], index: 1, kind: input, shape index: {}]
  %s2 = inlined_call_operand.vmem [shape: f32[16,8], index: 2, kind: input, shape index: {}]
  %s3 = inlined_call_operand.vmem [shape: f32[8,16], index: 3, kind: output, shape index: {}]
  %s4 = sld [smem:[#allocation0]]
  $region22: #{forward.1} parent=0
    _
  %s6 = ssub.s32 1, %s4
  %s7 = scalar_select 0, %s6, %s4
  // Predicated region
  $region2: #{forward.1} parent=0 // pred_check
    _
  $region3: #{forward.1} parent=0 // pred_check_branch
    %9 = sbr.rel (0) target = $region5
  $region4: #{forward.1} parent=0 // pred_region
    _
  $region5: #{forward.1} parent=0 // pred_fallthru
    _
  // Predicated region
  $region6: #{forward.1} parent=0 // pred_check
    _
  $region7: #{forward.1} parent=0 // pred_check_branch
    %11 = sbr.rel (0) target = $region9
  $region8: #{forward.1} parent=0 // pred_region
    _
  $region9: #{forward.1} parent=0 // pred_fallthru
    _
  // Predicated region
  $region10: #{forward.1} parent=0 // pred_check
    _
  $region11: #{forward.1} parent=0 // pred_check_branch
    %13 = sbr.rel (0) target = $region13
  $region12: #{forward.1} parent=0 // pred_region
    _
  $region13: #{forward.1} parent=0 // pred_fallthru
    _
  %v15 = vld [vmem:[%s1] sm:$0xf]
  %v16 = vld [vmem:[%s1 + $0x4] sm:$0xf]
  %v17 = vld [vmem:[%s1 + $0x8] sm:$0xf]
  %v18 = vld [vmem:[%s1 + $0xc] sm:$0xf]
  %v19 = vld [vmem:[%s1 + $0x10] sm:$0xf]
  %v20 = vld [vmem:[%s1 + $0x14] sm:$0xf]
  %v21 = vld [vmem:[%s1 + $0x18] sm:$0xf]
  %v22 = vld [vmem:[%s1 + $0x1c] sm:$0xf]
  %v23 = vld [vmem:[%s0] sm:$0xf]
  %v24 = vld [vmem:[%s0 + $0x4] sm:$0xf]
  %v25 = vld [vmem:[%s0 + $0x8] sm:$0x3]
  %v34 = vunpack.c.l.b16 %v15
  %v35 = vunpack.c.l.b16 %v16
  %v36 = vunpack.c.l.b16 %v17
  %v37 = vunpack.c.l.b16 %v18
  %v38 = vunpack.c.l.b16 %v19
  %v39 = vunpack.c.l.b16 %v20
  %v40 = vunpack.c.l.b16 %v21
  %v41 = vunpack.c.l.b16 %v22
  %v42 = vpack.c.b16 %v35, %v34
  %v43 = vpack.c.b16 %v37, %v36
  %v44 = vpack.c.b16 %v39, %v38
  %v45 = vpack.c.b16 %v41, %v40
  %v49 = vunpack.c.l.b16 %v23
  %v50 = vunpack.c.l.b16 %v24
  %v51 = vunpack.c.l.b16 %v25
  %v52 = vpack.c.b16 %v50, %v49
  %v53 = vpack.c.b16 %v51, %v51
  %vm55 = vcmask 162816
  %v57 = vsel %vm55, %v42, 0
  %v60 = vsel %vm55, %v43, 0
  %v63 = vsel %vm55, %v44, 0
  %v66 = vsel %vm55, %v45, 0
  %vm68 = vcmask 1041408
  %v70 = vsel %vm68, %v53, 0
  %72 = vmatprep.subr.bf16.mxu0 0
  %73 = vmatpush1.bf16.msra.mxu0 0
  %74 = vmatprep.subr.bf16.mxu0 0
  %75 = vmatpush1.bf16.msra.mxu0 0
  %76 = vmatprep.subr.bf16.mxu0 0
  %77 = vmatpush1.bf16.msra.mxu0 0
  %78 = vmatprep.subr.bf16.mxu0 0
  %79 = vmatpush1.bf16.msra.mxu0 0
  %80 = vmatprep.subr.bf16.mxu0 0
  %81 = vmatpush1.bf16.msra.mxu0 0
  %82 = vmatprep.subr.bf16.mxu0 0
  %83 = vmatpush1.bf16.msra.mxu0 0
  %84 = vmatprep.subr.bf16.mxu0 0
  %85 = vmatpush1.bf16.msra.mxu0 %v70
  %86 = vmatprep.subr.bf16.mxu0 0
  %87 = vmatpush1.bf16.msra.mxu0 %v52
  %88 = vmatprep.subr.bf16.mxu0 0
  %89 = vmatpush2.bf16.msra.mxu0 0
  %90 = vmatprep.subr.bf16.mxu0 0
  %91 = vmatpush2.bf16.msra.mxu0 0
  %92 = vmatprep.subr.bf16.mxu0 0
  %93 = vmatpush2.bf16.msra.mxu0 0
  %94 = vmatprep.subr.bf16.mxu0 0
  %95 = vmatpush2.bf16.msra.mxu0 0
  %96 = vmatprep.subr.bf16.mxu0 0
  %97 = vmatpush2.bf16.msra.mxu0 0
  %98 = vmatprep.subr.bf16.mxu0 0
  %99 = vmatpush2.bf16.msra.mxu0 0
  %100 = vmatprep.subr.bf16.mxu0 0
  %101 = vmatpush2.bf16.msra.mxu0 0
  %102 = vmatprep.subr.bf16.mxu0 0
  %103 = vmatpush2.bf16.msra.mxu0 0
  %104 = vmatprep.mubr.bf16.mxu0 0
  %105 = vmatmul.mubr.bf16.gmra.mxu0 %v57
  %v106 = vpop.f32.mrf.mxu0
  %v107 = vadd.f32 0.0, %v106
  %v108 = vpop.f32.mrf.mxu0
  %v109 = vpop.f32.mrf.mxu0
  %v110 = vadd.f32 0.0, %v109
  %v111 = vpop.f32.mrf.mxu0
  %112 = vmatprep.mubr.bf16.mxu0 0
  %113 = vmatmul.mubr.bf16.gmra.mxu0 %v60
  %v114 = vpop.f32.mrf.mxu0
  %v115 = vadd.f32 0.0, %v114
  %v116 = vpop.f32.mrf.mxu0
  %v117 = vpop.f32.mrf.mxu0
  %v118 = vadd.f32 0.0, %v117
  %v119 = vpop.f32.mrf.mxu0
  %120 = vmatprep.mubr.bf16.mxu0 0
  %121 = vmatmul.mubr.bf16.gmra.mxu0 %v63
  %v122 = vpop.f32.mrf.mxu0
  %v123 = vadd.f32 0.0, %v122
  %v124 = vpop.f32.mrf.mxu0
  %v125 = vpop.f32.mrf.mxu0
  %v126 = vadd.f32 0.0, %v125
  %v127 = vpop.f32.mrf.mxu0
  %128 = vmatprep.mubr.bf16.mxu0 0
  %129 = vmatmul.mubr.bf16.gmra.mxu0 %v66
  %v130 = vpop.f32.mrf.mxu0
  %v131 = vadd.f32 0.0, %v130
  %v132 = vpop.f32.mrf.mxu0
  %v133 = vpop.f32.mrf.mxu0
  %v134 = vadd.f32 0.0, %v133
  %v135 = vpop.f32.mrf.mxu0
  %136 = vdwg.mxu0
  %v137 = vmin.f32 %v107, %v115
  %v138 = vmin.f32 %v110, %v118
  %v139 = vmin.f32 %v137, %v123
  %v140 = vmin.f32 %v138, %v126
  %v141 = vmin.f32 %v139, %v131
  %v142 = vmin.f32 %v140, %v134
  %v143 = vld [vmem:[%s2] sm:$0xff]
  %v144 = vld [vmem:[%s2 + $0x8] sm:$0xff]
  %145 = vxpose.xlu0.b32.start [1/16] %v143, 128
  %146 = vxpose.xlu0.b32.cont [2/16] %v144, 128
  %147 = vxpose.xlu0.b32.cont [3/16] 0.0, 128
  %148 = vxpose.xlu0.b32.cont [4/16] 0.0, 128
  %149 = vxpose.xlu0.b32.cont [5/16] 0.0, 128
  %150 = vxpose.xlu0.b32.cont [6/16] 0.0, 128
  %151 = vxpose.xlu0.b32.cont [7/16] 0.0, 128
  %152 = vxpose.xlu0.b32.cont [8/16] 0.0, 128
  %153 = vxpose.xlu0.b32.cont [9/16] 0.0, 128
  %154 = vxpose.xlu0.b32.cont [10/16] 0.0, 128
  %155 = vxpose.xlu0.b32.cont [11/16] 0.0, 128
  %156 = vxpose.xlu0.b32.cont [12/16] 0.0, 128
  %157 = vxpose.xlu0.b32.cont [13/16] 0.0, 128
  %158 = vxpose.xlu0.b32.cont [14/16] 0.0, 128
  %159 = vxpose.xlu0.b32.cont [15/16] 0.0, 128
  %160 = vxpose.xlu0.b32.end [16/16] 0.0, 128
  %v161 = vpop.trf.xlu0
  %v162 = vpop.trf.xlu0
  %v163 = vpop.trf.xlu0
  %v164 = vpop.trf.xlu0
  %v165 = vpop.trf.xlu0
  %v166 = vpop.trf.xlu0
  %v167 = vpop.trf.xlu0
  %v168 = vpop.trf.xlu0
  %v169 = vpop.trf.xlu0
  %v170 = vpop.trf.xlu0
  %v171 = vpop.trf.xlu0
  %v172 = vpop.trf.xlu0
  %v173 = vpop.trf.xlu0
  %v174 = vpop.trf.xlu0
  %v175 = vpop.trf.xlu0
  %v176 = vpop.trf.xlu0
  %vm177 = vcmask 130048
  %v179 = vsel %vm177, %v161, 0
  %181 = vmatprep.subr.mxu0 0.0
  %182 = vmatpush1.msra.mxu0 0.0
  %183 = vmatprep.subr.mxu0 0.0
  %184 = vmatpush1.msra.mxu0 0.0
  %185 = vmatprep.subr.mxu0 0.0
  %186 = vmatpush1.msra.mxu0 0.0
  %187 = vmatprep.subr.mxu0 0.0
  %188 = vmatpush1.msra.mxu0 0.0
  %189 = vmatprep.subr.mxu0 0.0
  %190 = vmatpush1.msra.mxu0 0.0
  %191 = vmatprep.subr.mxu0 0.0
  %192 = vmatpush1.msra.mxu0 0.0
  %193 = vmatprep.subr.mxu0 0.0
  %194 = vmatpush1.msra.mxu0 0.0
  %195 = vmatprep.subr.mxu0 0.0
  %196 = vmatpush1.msra.mxu0 0.0
  %197 = vmatprep.subr.mxu0 0.0
  %198 = vmatpush1.msra.mxu0 0.0
  %199 = vmatprep.subr.mxu0 0.0
  %200 = vmatpush1.msra.mxu0 0.0
  %201 = vmatprep.subr.mxu0 0.0
  %202 = vmatpush1.msra.mxu0 0.0
  %203 = vmatprep.subr.mxu0 0.0
  %204 = vmatpush1.msra.mxu0 0.0
  %205 = vmatprep.subr.mxu0 0.0
  %206 = vmatpush1.msra.mxu0 0.0
  %207 = vmatprep.subr.mxu0 0.0
  %208 = vmatpush1.msra.mxu0 0.0
  %209 = vmatprep.subr.mxu0 0.0
  %210 = vmatpush1.msra.mxu0 %v142
  %211 = vmatprep.subr.mxu0 0.0
  %212 = vmatpush1.msra.mxu0 %v141
  %213 = vmatprep.subr.mxu0 0.0
  %214 = vmatpush2.msra.mxu0 0.0
  %215 = vmatprep.subr.mxu0 0.0
  %216 = vmatpush2.msra.mxu0 0.0
  %217 = vmatprep.subr.mxu0 0.0
  %218 = vmatpush2.msra.mxu0 0.0
  %219 = vmatprep.subr.mxu0 0.0
  %220 = vmatpush2.msra.mxu0 0.0
  %221 = vmatprep.subr.mxu0 0.0
  %222 = vmatpush2.msra.mxu0 0.0
  %223 = vmatprep.subr.mxu0 0.0
  %224 = vmatpush2.msra.mxu0 0.0
  %225 = vmatprep.subr.mxu0 0.0
  %226 = vmatpush2.msra.mxu0 0.0
  %227 = vmatprep.subr.mxu0 0.0
  %228 = vmatpush2.msra.mxu0 0.0
  %229 = vmatprep.subr.mxu0 0.0
  %230 = vmatpush2.msra.mxu0 0.0
  %231 = vmatprep.subr.mxu0 0.0
  %232 = vmatpush2.msra.mxu0 0.0
  %233 = vmatprep.subr.mxu0 0.0
  %234 = vmatpush2.msra.mxu0 0.0
  %235 = vmatprep.subr.mxu0 0.0
  %236 = vmatpush2.msra.mxu0 0.0
  %237 = vmatprep.subr.mxu0 0.0
  %238 = vmatpush2.msra.mxu0 0.0
  %239 = vmatprep.subr.mxu0 0.0
  %240 = vmatpush2.msra.mxu0 0.0
  %241 = vmatprep.subr.mxu0 0.0
  %242 = vmatpush2.msra.mxu0 0.0
  %243 = vmatprep.subr.mxu0 0.0
  %244 = vmatpush2.msra.mxu0 0.0
  %245 = vmatprep.mubr.f32.mxu0 0.0
  %246 = vmatmul.mubr.f32.gmra.mxu0 %v179
  %v247 = vpop.f32.mrf.mxu0
  %v248 = vadd.f32 0.0, %v247
  %v249 = vpop.f32.mrf.mxu0
  %250 = vdwg.mxu0
  %251 = vst [vmem:[%s3] sm:$0xff] %v248
  // Predicated region
  $region14: #{forward.1} parent=0 // pred_check
    _
  $region15: #{forward.1} parent=0 // pred_check_branch
    %253 = sbr.rel (0) target = $region17
  $region16: #{forward.1} parent=0 // pred_region
    _
  $region17: #{forward.1} parent=0 // pred_fallthru
    _
  // Predicated region
  $region18: #{forward.1} parent=0 // pred_check
    _
  $region19: #{forward.1} parent=0 // pred_check_branch
    %255 = sbr.rel (0) target = $region21
  $region20: #{forward.1} parent=0 // pred_region
    _
  $region21: #{forward.1} parent=0 // pred_fallthru
    _

</llo_original>
